<compile_context>
chip_gen: v7x
topology: tpu7x:2x2x1
jax: 0.10.0
libtpu: 0.0.40
codegen_flags: <defaults>
</compile_context>

<pallas_src>
import functools
import math

import jax
import jax.numpy as jnp
from jax.experimental import pallas as pl
from jax.experimental.pallas import tpu as pltpu


def _gelu_new(x):
    # NewGELUActivation: 0.5*x*(1 + tanh(sqrt(2/pi)*(x + 0.044715*x^3)))
    # x*x*x keeps the cube on the VPU; only tanh uses the EUP slot.
    c = math.sqrt(2.0 / math.pi)
    return 0.5 * x * (1.0 + jnp.tanh(c * (x + 0.044715 * (x * x * x))))


def ffn_kernel(x_ref, w1_ref, b1_ref, w2_ref, b2_ref, o_ref, acc_ref, *,
               act_dtype):
    ti = pl.program_id(1)

    @pl.when(ti == 0)
    def _init():
        acc_ref[...] = jnp.zeros_like(acc_ref)

    # intermediate_dense (bf16 operands, f32 MXU accumulation)
    h = jnp.dot(x_ref[...], w1_ref[...], preferred_element_type=jnp.float32)
    # bias + gelu_new in act_dtype (bf16 on v6e/v7x which have bf16 VPU/EUP,
    # f32 on v5e).  intermediate_dropout: identity (p=0.0 / eval).
    h = (h + b1_ref[...]).astype(act_dtype)
    h = _gelu_new(h)

    # output_dense partial product, accumulated over the I (reduction) axis.
    acc_ref[...] += jnp.dot(h.astype(w2_ref.dtype), w2_ref[...],
                            preferred_element_type=jnp.float32)

    @pl.when(ti == pl.num_programs(1) - 1)
    def _finalize():
        # output bias added exactly once; single lane-dense (TM, H) store.
        o_ref[...] = (acc_ref[...] + b2_ref[...]).astype(o_ref.dtype)
        # output_dropout: identity (p=0.0 / eval)


# --------------------------------------------------------------------------
# Per-generation tuning
# --------------------------------------------------------------------------
def _tpu_tuning():
    """Returns (tm_pref, ti_pref, ti_aligns, vmem_limit_bytes,
                elementwise_bf16, want_two_m_tiles)."""
    kind = ""
    try:
        kind = jax.devices()[0].device_kind.lower()
    except Exception:
        pass
    vmem_cap = None
    try:
        vmem_cap = getattr(pltpu.get_tpu_info(), "vmem_capacity_bytes", None)
    except Exception:
        pass

    is_v5 = "v5" in kind
    is_v6 = "v6" in kind
    is_v7 = ("v7" in kind) or (vmem_cap is not None and vmem_cap <= 80 * 2**20)

    if is_v7:
        # 64 MiB VMEM/TC, 2 TensorCores, 3.2 TB/s HBM: fit VMEM, keep 2 M-tiles.
        return 256, 512, (256, 128), 44 * 2**20, True, True
    if is_v6:
        # 128 MiB VMEM, 256-wide MXU, bf16 VPU/EUP: big tiles, bf16 elementwise.
        return 512, 1024, (256, 128), 96 * 2**20, True, False
    if is_v5:
        # 128 MiB VMEM, 128-wide MXU, no bf16 VPU: big tiles, f32 elementwise.
        # (If profiling shows exposed W1/W2 DMA, pl.Buffered(3) on those specs
        #  is the next lever.)
        return 512, 1024, (128,), 96 * 2**20, False, False
    # Unknown / interpret: conservative defaults.
    return 256, 512, (256, 128), 48 * 2**20, False, False


def _pick_tile(dim, preferred, aligns):
    """Largest tile <= preferred that is a multiple of one of `aligns` and
    divides dim (aligns tried in order); falls back to the full dim."""
    if dim <= preferred:
        return dim
    for align in aligns:
        t = (preferred // align) * align
        while t >= align:
            if dim % t == 0:
                return t
            t -= align
    return dim


def _pick_m_tiling(M, tm_pref, want_two_tiles):
    """Returns (TM, Mp) with TM a multiple of 8 or TM == Mp."""
    if M <= tm_pref:
        if want_two_tiles and M > 8:
            TM = (((M + 1) // 2) + 7) // 8 * 8     # ceil(M/2), rounded up to x8
            Mp = 2 * TM
        else:
            TM, Mp = M, M
    else:
        TM = tm_pref
        Mp = pl.cdiv(M, TM) * TM
    return TM, Mp


def _vmem_estimate(TM, TI, H, in_itemsize, out_itemsize):
    dbl = 2  # double-buffered pipelined tiles
    est = dbl * (TM * H * in_itemsize      # x tile
                 + H * TI * in_itemsize    # W1 tile
                 + TI * 4                  # b1 tile (f32)
                 + TI * H * in_itemsize    # W2 tile
                 + H * 4                   # b2 (f32)
                 + TM * H * out_itemsize)  # output tile
    est += TM * H * 4                      # f32 accumulator scratch
    est += TM * TI * (4 + in_itemsize)     # h (f32) + downcast h temporaries
    return est


def feed_forward(x, w1, b1, w2, b2, *, compute_dtype=jnp.bfloat16):
    """x: (B, T, H). w1: (H, I), b1: (I,), w2: (I, H), b2: (H,).

    Matmul operands are cast to `compute_dtype` (bf16 by default -> native MXU
    path with f32 accumulation).  Biases are applied in f32.  Output keeps
    x.dtype.
    """
    B, T, H = x.shape
    I = w1.shape[1]
    M = B * T
    out_dtype = x.dtype

    (tm_pref, ti_pref, ti_aligns, vmem_limit,
     elementwise_bf16, want_two_m_tiles) = _tpu_tuning()

    # Cast matmul operands to the compute dtype (bf16 by default).
    x2d = x.reshape(M, H).astype(compute_dtype)
    w1c = w1.astype(compute_dtype)
    w2c = w2.astype(compute_dtype)
    in_itemsize = jnp.dtype(compute_dtype).itemsize
    out_itemsize = jnp.dtype(out_dtype).itemsize

    # Elementwise (bias + gelu) dtype: bf16 only when compute is bf16 AND the
    # chip has a bf16 VPU/EUP (v6e/v7x); otherwise f32.
    if compute_dtype == jnp.bfloat16 and elementwise_bf16:
        act_dtype = jnp.bfloat16
    else:
        act_dtype = jnp.float32

    # Tile selection with a VMEM-budget fit loop (shrink TI first, then TM).
    budget = int(0.8 * vmem_limit)
    tm_cur, ti_cur = tm_pref, ti_pref
    while True:
        TI = _pick_tile(I, ti_cur, ti_aligns)
        TM, Mp = _pick_m_tiling(M, tm_cur, want_two_m_tiles)
        if _vmem_estimate(TM, TI, H, in_itemsize, out_itemsize) <= budget:
            break
        min_align = min(ti_aligns)
        if ti_cur > min_align:
            ti_cur = max(min_align, ti_cur // 2)
        elif tm_cur > 64:
            tm_cur = max(64, tm_cur // 2)
        else:
            break

    if Mp != M:
        x2d = jnp.pad(x2d, ((0, Mp - M), (0, 0)))

    b1_2d = b1.reshape(1, I).astype(jnp.float32)
    b2_2d = b2.reshape(1, H).astype(jnp.float32)

    grid = (Mp // TM, I // TI)
    n_m_tiles = grid[0]

    # HBM traffic: weights (and biases) are re-streamed once per M-tile because
    # the ki reduction iterates inside each mi tile.
    cost = pl.CostEstimate(
        flops=4 * Mp * H * I,                               # two (M,H,I) matmuls
        transcendentals=Mp * I,                             # tanh per h element
        bytes_accessed=(n_m_tiles * 2 * H * I * in_itemsize # W1 + W2 per M-tile
                        + n_m_tiles * (I + H) * 4           # b1 + b2 per M-tile
                        + Mp * H * in_itemsize              # x read
                        + Mp * H * out_itemsize),           # output write
    )

    out = pl.pallas_call(
        functools.partial(ffn_kernel, act_dtype=act_dtype),
        out_shape=jax.ShapeDtypeStruct((Mp, H), out_dtype),
        grid_spec=pltpu.PrefetchScalarGridSpec(
            num_scalar_prefetch=0,
            grid=grid,
            in_specs=[
                pl.BlockSpec((TM, H), lambda mi, ki: (mi, 0)),   # x rows
                pl.BlockSpec((H, TI), lambda mi, ki: (0, ki)),   # W1 column tile
                pl.BlockSpec((1, TI), lambda mi, ki: (0, ki)),   # b1 tile (f32)
                pl.BlockSpec((TI, H), lambda mi, ki: (ki, 0)),   # W2 row tile
                pl.BlockSpec((1, H), lambda mi, ki: (0, 0)),     # b2 (f32)
            ],
            out_specs=pl.BlockSpec((TM, H), lambda mi, ki: (mi, 0)),
            scratch_shapes=[pltpu.VMEM((TM, H), jnp.float32)],   # f32 accumulator
        ),
        compiler_params=pltpu.CompilerParams(
            dimension_semantics=("parallel", "arbitrary"),
            vmem_limit_bytes=int(vmem_limit),
        ),
        cost_estimate=cost,
    )(x2d, w1c, b1_2d, w2c, b2_2d)

    if Mp != M:
        out = out[:M]
    return out.reshape(B, T, H)


def init_params(key, hidden_size, intermediate_size):
    """Deterministic init mimicking nn.Linear (uniform(-1/sqrt(fan_in), +))."""
    k1, k2, k3, k4 = jax.random.split(key, 4)
    bound1 = 1.0 / math.sqrt(hidden_size)
    bound2 = 1.0 / math.sqrt(intermediate_size)
    w1 = jax.random.uniform(k1, (hidden_size, intermediate_size),
                            jnp.float32, -bound1, bound1)
    b1 = jax.random.uniform(k2, (intermediate_size,),
                            jnp.float32, -bound1, bound1)
    w2 = jax.random.uniform(k3, (intermediate_size, hidden_size),
                            jnp.float32, -bound2, bound2)
    b2 = jax.random.uniform(k4, (hidden_size,),
                            jnp.float32, -bound2, bound2)
    return w1, b1, w2, b2


def reference(x, w1, b1, w2, b2):
    h = x @ w1 + b1
    h = _gelu_new(h)
    return h @ w2 + b2


if __name__ == "__main__":
    key = jax.random.PRNGKey(0)
    B, T, H, I = 2, 8, 32, 64  # batch, seq, hidden_size, intermediate_size

    kx, kp = jax.random.split(key)
    x = jax.random.normal(kx, (B, T, H), jnp.float32)
    w1, b1, w2, b2 = init_params(kp, H, I)
    ref = reference(x, w1, b1, w2, b2)

    # --- default path: bf16 MXU operands, f32 accumulation, f32 output ------
    out_bf16 = jax.block_until_ready(feed_forward(x, w1, b1, w2, b2))
    assert out_bf16.shape == (B, T, H) and out_bf16.dtype == x.dtype
    err_bf16 = jnp.max(jnp.abs(out_bf16 - ref))
    assert jnp.allclose(out_bf16, ref, atol=3e-2, rtol=3e-2), \
        f"bf16-compute max err {err_bf16}"

    # --- strict f32 compute path (tight check of the fused kernel math) -----
    out_f32 = jax.block_until_ready(
        feed_forward(x, w1, b1, w2, b2, compute_dtype=jnp.float32))
    err_f32 = jnp.max(jnp.abs(out_f32 - ref))
    assert jnp.allclose(out_f32, ref, atol=1e-4, rtol=1e-4), \
        f"f32 max err {err_f32}"

    print("KERNEL_OK")
</pallas_src>

<mosaic_0001>
module attributes {stable_mosaic.version = 11 : i64} {
  func.func @ffn_kernel(%arg0: i32, %arg1: i32, %arg2: memref<16x32xbf16, #tpu.memory_space<vmem>>, %arg3: memref<32x64xbf16, #tpu.memory_space<vmem>>, %arg4: memref<1x64xf32, #tpu.memory_space<vmem>>, %arg5: memref<64x32xbf16, #tpu.memory_space<vmem>>, %arg6: memref<1x32xf32, #tpu.memory_space<vmem>>, %arg7: memref<16x32xf32, #tpu.memory_space<vmem>>, %arg8: memref<16x32xf32, #tpu.memory_space<vmem>>) attributes {dimension_semantics = [#tpu.dimension_semantics<parallel>, #tpu.dimension_semantics<arbitrary>], iteration_bounds = array<i64: 1, 1>, scalar_prefetch = 0 : i64, scratch_operands = 1 : i64, tpu.core_type = #tpu.core_type<tc>, window_params = [{transform_indices = @transform_0, window_bounds = array<i64: 16, 32>}, {transform_indices = @transform_1, window_bounds = array<i64: 32, 64>}, {transform_indices = @transform_2, window_bounds = array<i64: 1, 64>}, {transform_indices = @transform_3, window_bounds = array<i64: 64, 32>}, {pipeline_mode = #tpu.pipeline_mode<synchronous>, transform_indices = @transform_4, window_bounds = array<i64: 1, 32>}, {transform_indices = @transform_5, window_bounds = array<i64: 16, 32>}]} {
    %c0_i32 = arith.constant 0 : i32
    %0 = arith.cmpi eq, %arg1, %c0_i32 : i32
    %1 = arith.extui %0 : i1 to i32
    %c0_i32_0 = arith.constant 0 : i32
    %2 = arith.cmpi ne, %1, %c0_i32_0 : i32
    scf.if %2 {
      %cst_19 = arith.constant 0.000000e+00 : f32
      %31 = vector.broadcast %cst_19 : f32 to vector<16x32xf32>
      %c0_20 = arith.constant 0 : index
      %c0_21 = arith.constant 0 : index
      %32 = vector.load %arg8[%c0_20, %c0_21] : memref<16x32xf32, #tpu.memory_space<vmem>>, vector<16x32xf32>
      tpu.vector_store %arg8[%c0_20, %c0_21], %31 {strides = array<i32>} : memref<16x32xf32, #tpu.memory_space<vmem>>, vector<16x32xf32>,
    } else {
    }
    %c0 = arith.constant 0 : index
    %c0_1 = arith.constant 0 : index
    %3 = vector.load %arg2[%c0, %c0_1] : memref<16x32xbf16, #tpu.memory_space<vmem>>, vector<16x32xbf16>
    %c0_2 = arith.constant 0 : index
    %c0_3 = arith.constant 0 : index
    %4 = vector.load %arg3[%c0_2, %c0_3] : memref<32x64xbf16, #tpu.memory_space<vmem>>, vector<32x64xbf16>
    %cst = arith.constant dense<0.000000e+00> : vector<16x64xf32>
    %5 = tpu.matmul %3, %4, %cst {dimension_numbers = #tpu.dot_dimension_numbers<[1], [0], [0], [1], [0, 0, 1, 1], [], []>} : vector<16x32xbf16>, vector<32x64xbf16>, vector<16x64xf32> -> vector<16x64xf32>
    %c0_4 = arith.constant 0 : index
    %c0_5 = arith.constant 0 : index
    %6 = vector.load %arg4[%c0_4, %c0_5] : memref<1x64xf32, #tpu.memory_space<vmem>>, vector<1x64xf32>
    %7 = vector.broadcast %6 : vector<1x64xf32> to vector<16x64xf32>
    %8 = arith.addf %5, %7 : vector<16x64xf32>
    %cst_6 = arith.constant 5.000000e-01 : f32
    %9 = vector.broadcast %cst_6 : f32 to vector<16x64xf32>
    %10 = arith.mulf %9, %8 : vector<16x64xf32>
    %11 = arith.mulf %8, %8 : vector<16x64xf32>
    %12 = arith.mulf %11, %8 : vector<16x64xf32>
    %cst_7 = arith.constant 4.471500e-02 : f32
    %13 = vector.broadcast %cst_7 : f32 to vector<16x64xf32>
    %14 = arith.mulf %13, %12 : vector<16x64xf32>
    %15 = arith.addf %8, %14 : vector<16x64xf32>
    %cst_8 = arith.constant 0.797884583 : f32
    %16 = vector.broadcast %cst_8 : f32 to vector<16x64xf32>
    %17 = arith.mulf %16, %15 : vector<16x64xf32>
    %18 = math.tanh %17 : vector<16x64xf32>
    %cst_9 = arith.constant 1.000000e+00 : f32
    %19 = vector.broadcast %cst_9 : f32 to vector<16x64xf32>
    %20 = arith.addf %19, %18 : vector<16x64xf32>
    %21 = arith.mulf %10, %20 : vector<16x64xf32>
    %c0_10 = arith.constant 0 : index
    %c0_11 = arith.constant 0 : index
    %22 = vector.load %arg8[%c0_10, %c0_11] : memref<16x32xf32, #tpu.memory_space<vmem>>, vector<16x32xf32>
    %23 = arith.truncf %21 : vector<16x64xf32> to vector<16x64xbf16>
    %c0_12 = arith.constant 0 : index
    %c0_13 = arith.constant 0 : index
    %24 = vector.load %arg5[%c0_12, %c0_13] : memref<64x32xbf16, #tpu.memory_space<vmem>>, vector<64x32xbf16>
    %cst_14 = arith.constant dense<0.000000e+00> : vector<16x32xf32>
    %25 = tpu.matmul %23, %24, %cst_14 {dimension_numbers = #tpu.dot_dimension_numbers<[1], [0], [0], [1], [0, 0, 1, 1], [], []>} : vector<16x64xbf16>, vector<64x32xbf16>, vector<16x32xf32> -> vector<16x32xf32>
    %26 = arith.addf %22, %25 : vector<16x32xf32>
    %c0_15 = arith.constant 0 : index
    %c0_16 = arith.constant 0 : index
    %27 = vector.load %arg8[%c0_15, %c0_16] : memref<16x32xf32, #tpu.memory_space<vmem>>, vector<16x32xf32>
    tpu.vector_store %arg8[%c0_15, %c0_16], %26 {strides = array<i32>} : memref<16x32xf32, #tpu.memory_space<vmem>>, vector<16x32xf32>,
    %c0_i32_17 = arith.constant 0 : i32
    %28 = arith.cmpi eq, %arg1, %c0_i32_17 : i32
    %29 = arith.extui %28 : i1 to i32
    %c0_i32_18 = arith.constant 0 : i32
    %30 = arith.cmpi ne, %29, %c0_i32_18 : i32
    scf.if %30 {
      %c0_19 = arith.constant 0 : index
      %c0_20 = arith.constant 0 : index
      %31 = vector.load %arg8[%c0_19, %c0_20] : memref<16x32xf32, #tpu.memory_space<vmem>>, vector<16x32xf32>
      %c0_21 = arith.constant 0 : index
      %c0_22 = arith.constant 0 : index
      %32 = vector.load %arg6[%c0_21, %c0_22] : memref<1x32xf32, #tpu.memory_space<vmem>>, vector<1x32xf32>
      %33 = vector.broadcast %32 : vector<1x32xf32> to vector<16x32xf32>
      %34 = arith.addf %31, %33 : vector<16x32xf32>
      %c0_23 = arith.constant 0 : index
      %c0_24 = arith.constant 0 : index
      %35 = vector.load %arg7[%c0_23, %c0_24] : memref<16x32xf32, #tpu.memory_space<vmem>>, vector<16x32xf32>
      tpu.vector_store %arg7[%c0_23, %c0_24], %34 {strides = array<i32>} : memref<16x32xf32, #tpu.memory_space<vmem>>, vector<16x32xf32>,
    } else {
    }
    return
  }
  func.func @transform_0(%arg0: i32, %arg1: i32) -> (i32, i32) {
    %c0_i32 = arith.constant 0 : i32
    %c0_i32_0 = arith.constant 0 : i32
    return %arg0, %c0_i32 : i32, i32
  }
  func.func @transform_1(%arg0: i32, %arg1: i32) -> (i32, i32) {
    %c0_i32 = arith.constant 0 : i32
    %c0_i32_0 = arith.constant 0 : i32
    return %c0_i32, %arg1 : i32, i32
  }
  func.func @transform_2(%arg0: i32, %arg1: i32) -> (i32, i32) {
    %c0_i32 = arith.constant 0 : i32
    %c0_i32_0 = arith.constant 0 : i32
    return %c0_i32, %arg1 : i32, i32
  }
  func.func @transform_3(%arg0: i32, %arg1: i32) -> (i32, i32) {
    %c0_i32 = arith.constant 0 : i32
    %c0_i32_0 = arith.constant 0 : i32
    return %arg1, %c0_i32 : i32, i32
  }
  func.func @transform_4(%arg0: i32, %arg1: i32) -> (i32, i32) {
    %c0_i32 = arith.constant 0 : i32
    %c0_i32_0 = arith.constant 0 : i32
    %c0_i32_1 = arith.constant 0 : i32
    return %c0_i32, %c0_i32_0 : i32, i32
  }
  func.func @transform_5(%arg0: i32, %arg1: i32) -> (i32, i32) {
    %c0_i32 = arith.constant 0 : i32
    %c0_i32_0 = arith.constant 0 : i32
    return %arg0, %c0_i32 : i32, i32
  }
}

</mosaic_0001>

<llo_original>
// kernel: tpu_custom_call.1
$region0: #{tpu_custom_call.1}
  #allocation0 [shape = 'u32[]', space=smem, size = 0x4, offset = 0x4, fixed_abs, tag = 'smem constant byte address 0x4 - core index']
  #allocation1 [shape = 'u32[144,128]{1,0:T(1,128)}', space=vmem, size = 0x12000, scoped, tag = 'internal scratch']
  #allocation2 [shape = 'f32[16,32]{1,0:T(8,128)}', space=vmem, size = 0x2000, scoped, tag = 'scratch operand']
  %s0 = inlined_call_operand.vmem [shape: bf16[16,32], index: 0, kind: input, shape index: {}]
  %s1 = inlined_call_operand.vmem [shape: bf16[32,64], index: 1, kind: input, shape index: {}]
  %s2 = inlined_call_operand.vmem [shape: f32[1,64], index: 2, kind: input, shape index: {}]
  %s3 = inlined_call_operand.vmem [shape: bf16[64,32], index: 3, kind: input, shape index: {}]
  %s4 = inlined_call_operand.vmem [shape: f32[1,32], index: 4, kind: input, shape index: {}]
  %s5 = inlined_call_operand.hbm [shape: f32[16,32], index: 5, kind: output, shape index: {}]
  %s6 = sld [smem:[#allocation0]]
  $region38: #{tpu_custom_call.1} parent=0
    _
  %s8 = ssub.s32 1, %s6
  %s9 = scalar_select 0, %s8, %s6
  $region1: #{tpu_custom_call.1} parent=0
    #allocation3 [shape = 'u8[8192]{0}', space=vmem, size = 0x2000, scoped, tag = 'output window, operand 0, single buffered']
    #allocation4 [shape = 's32[1]{0}', space=sflag, size = 0x4, scoped, tag = 'scoped memory for tpu_custom_call.1']
    %10 = vsyncpa [#allocation4], 0
    // Predicated region
    $region2: #{tpu_custom_call.1} parent=1 // pred_check
      _
    $region3: #{tpu_custom_call.1} parent=1 // pred_check_branch
      %12 = sbr.rel (0) target = $region5
    $region4: #{tpu_custom_call.1} parent=1 // pred_region
      _
    $region5: #{tpu_custom_call.1} parent=1 // pred_fallthru
      _
    // Predicated region
    $region6: #{tpu_custom_call.1} parent=1 // pred_check
      _
    $region7: #{tpu_custom_call.1} parent=1 // pred_check_branch
      %14 = sbr.rel (0) target = $region9
    $region8: #{tpu_custom_call.1} parent=1 // pred_region
      _
    $region9: #{tpu_custom_call.1} parent=1 // pred_fallthru
      _
    // Predicated region
    $region10: #{tpu_custom_call.1} parent=1 // pred_check
      _
    $region11: #{tpu_custom_call.1} parent=1 // pred_check_branch
      %16 = sbr.rel (0) target = $region13
    $region12: #{tpu_custom_call.1} parent=1 // pred_region
      _
    $region13: #{tpu_custom_call.1} parent=1 // pred_fallthru
      _
    // Predicated region
    $region14: #{tpu_custom_call.1} parent=1 // pred_check
      _
    $region15: #{tpu_custom_call.1} parent=1 // pred_check_branch
      %18 = sbr.rel (0) target = $region17
    $region16: #{tpu_custom_call.1} parent=1 // pred_region
      _
    $region17: #{tpu_custom_call.1} parent=1 // pred_fallthru
      _
    // Predicated region
    $region18: #{tpu_custom_call.1} parent=1 // pred_check
      _
    $region19: #{tpu_custom_call.1} parent=1 // pred_check_branch
      %20 = sbr.rel (0) target = $region21
    $region20: #{tpu_custom_call.1} parent=1 // pred_region
      _
    $region21: #{tpu_custom_call.1} parent=1 // pred_fallthru
      _
    %p22 = scmp.eq.s32.totalorder 0, 0
    // Predicated region
    $region22: #{tpu_custom_call.1} parent=1 // pred_check
      %p23 = pneg %p22
    $region23: #{tpu_custom_call.1} parent=1 // pred_check_branch
      %25 = sbr.rel (%p23) target = $region25
    $region24: #{tpu_custom_call.1} parent=1 // pred_region
      %vm26 = vcmask 261120
      %27 = vst.msk [vmem:[#allocation2] sm:$0xff] %vm26, 0.0
      %28 = vst.msk [vmem:[#allocation2 + $0x8] sm:$0xff] %vm26, 0.0
    $region25: #{tpu_custom_call.1} parent=1 // pred_fallthru
      _
    %v29 = vld [vmem:[%s0] sm:$0xf]
    %v30 = vld [vmem:[%s0 + $0x4] sm:$0xf]
    %v31 = vld [vmem:[%s1] sm:$0xf]
    %v32 = vld [vmem:[%s1 + $0x4] sm:$0xf]
    %v33 = vld [vmem:[%s1 + $0x8] sm:$0xf]
    %v34 = vld [vmem:[%s1 + $0xc] sm:$0xf]
    %v35 = vld [vmem:[%s2] sm:$0x1]
    %v37 = vlaneseq
    %v38 = vshrl.u32 %v37, 7
    %v39 = vsub.s32 0, %v38
    %v40 = vrot.slane %v35, %v39
    %v44 = vunpack.c.l.b16 %v29
    %v45 = vunpack.c.l.b16 %v30
    %v46 = vpack.c.b16 %v45, %v44
    %v51 = vunpack.c.l.b16 %v31
    %v52 = vunpack.c.l.b16 %v32
    %v53 = vunpack.c.l.b16 %v33
    %v54 = vunpack.c.l.b16 %v34
    %v55 = vpack.c.b16 %v52, %v51
    %v56 = vpack.c.b16 %v54, %v53
    %vm59 = vcmask 261120
    %v61 = vsel %vm59, %v46, 0
    %63 = vmatprep.subr.bf16.mxu0 0
    %64 = vmatpush1.bf16.msra.mxu0 %v55
    %65 = vmatprep.subr.bf16.mxu0 0
    %66 = vmatpush1.bf16.msra.mxu0 %v56
    %67 = vmatprep.subr.bf16.mxu0 0
    %68 = vmatpush1.bf16.msra.mxu0 0
    %69 = vmatprep.subr.bf16.mxu0 0
    %70 = vmatpush1.bf16.msra.mxu0 0
    %71 = vmatprep.subr.bf16.mxu0 0
    %72 = vmatpush1.bf16.msra.mxu0 0
    %73 = vmatprep.subr.bf16.mxu0 0
    %74 = vmatpush1.bf16.msra.mxu0 0
    %75 = vmatprep.subr.bf16.mxu0 0
    %76 = vmatpush1.bf16.msra.mxu0 0
    %77 = vmatprep.subr.bf16.mxu0 0
    %78 = vmatpush1.bf16.msra.mxu0 0
    %79 = vmatprep.subr.bf16.mxu0 0
    %80 = vmatpush1.bf16.msra.mxu0 0
    %81 = vmatprep.subr.bf16.mxu0 0
    %82 = vmatpush1.bf16.msra.mxu0 0
    %83 = vmatprep.subr.bf16.mxu0 0
    %84 = vmatpush1.bf16.msra.mxu0 0
    %85 = vmatprep.subr.bf16.mxu0 0
    %86 = vmatpush1.bf16.msra.mxu0 0
    %87 = vmatprep.subr.bf16.mxu0 0
    %88 = vmatpush1.bf16.msra.mxu0 0
    %89 = vmatprep.subr.bf16.mxu0 0
    %90 = vmatpush1.bf16.msra.mxu0 0
    %91 = vmatprep.subr.bf16.mxu0 0
    %92 = vmatpush1.bf16.msra.mxu0 0
    %93 = vmatprep.subr.bf16.mxu0 0
    %94 = vmatpush1.bf16.msra.mxu0 0
    %95 = vmatprep.mubr.bf16.mxu0 0
    %96 = vmatmul.mubr.bf16.gmra.mrb[0].mxu0 %v61
    %v97 = vpop.f32.mrb[0].mxu0
    %v98 = vadd.f32 %v40, %v97
    %v99 = vpop.f32.mrb[0].mxu0
    %v100 = vpop.f32.mrb[0].mxu0
    %v101 = vadd.f32 %v40, %v100
    %v102 = vpop.f32.mrb[0].mxu0
    %103 = vdwg.mxu0
    %v104 = vmul.f32 %v98, 0.5
    %v105 = vmul.f32 %v101, 0.5
    %v106 = vmul.f32 %v98, %v98
    %v107 = vmul.f32 %v101, %v101
    %v108 = vmul.f32 %v106, %v98
    %v109 = vmul.f32 %v107, %v101
    %v110 = vmul.f32 %v108, 0.044715
    %v111 = vmul.f32 %v109, 0.044715
    %v112 = vadd.f32 %v98, %v110
    %v113 = vadd.f32 %v101, %v111
    %v114 = vmul.f32 %v112, 0.7978846
    %v115 = vmul.f32 %v113, 0.7978846
    %v116 = vtanh.pop %v114
    %v117 = vtanh.pop %v115
    %v118 = vadd.f32 %v116, 1.0
    %v119 = vadd.f32 %v117, 1.0
    %v120 = vmul.f32 %v104, %v118
    %v121 = vmul.f32 %v105, %v119
    %v122 = vld [vmem:[#allocation2] sm:$0xff]
    %v123 = vld [vmem:[#allocation2 + $0x8] sm:$0xff]
    %v124 = vpack.c.bf16 %v121, %v120
    %v125 = vld [vmem:[%s3] sm:$0xf]
    %v126 = vld [vmem:[%s3 + $0x4] sm:$0xf]
    %v127 = vld [vmem:[%s3 + $0x8] sm:$0xf]
    %v128 = vld [vmem:[%s3 + $0xc] sm:$0xf]
    %v129 = vld [vmem:[%s3 + $0x10] sm:$0xf]
    %v130 = vld [vmem:[%s3 + $0x14] sm:$0xf]
    %v131 = vld [vmem:[%s3 + $0x18] sm:$0xf]
    %v132 = vld [vmem:[%s3 + $0x1c] sm:$0xf]
    %v141 = vunpack.c.l.b16 %v125
    %v142 = vunpack.c.l.b16 %v126
    %v143 = vunpack.c.l.b16 %v127
    %v144 = vunpack.c.l.b16 %v128
    %v145 = vunpack.c.l.b16 %v129
    %v146 = vunpack.c.l.b16 %v130
    %v147 = vunpack.c.l.b16 %v131
    %v148 = vunpack.c.l.b16 %v132
    %v149 = vpack.c.b16 %v142, %v141
    %v150 = vpack.c.b16 %v144, %v143
    %v151 = vpack.c.b16 %v146, %v145
    %v152 = vpack.c.b16 %v148, %v147
    %vm157 = vcmask 523264
    %v159 = vsel %vm157, %v124, 0
    %161 = vmatprep.subr.bf16.mxu0 0
    %162 = vmatpush1.bf16.msra.mxu0 %v149
    %163 = vmatprep.subr.bf16.mxu0 0
    %164 = vmatpush1.bf16.msra.mxu0 %v150
    %165 = vmatprep.subr.bf16.mxu0 0
    %166 = vmatpush1.bf16.msra.mxu0 %v151
    %167 = vmatprep.subr.bf16.mxu0 0
    %168 = vmatpush1.bf16.msra.mxu0 %v152
    %169 = vmatprep.subr.bf16.mxu0 0
    %170 = vmatpush1.bf16.msra.mxu0 0
    %171 = vmatprep.subr.bf16.mxu0 0
    %172 = vmatpush1.bf16.msra.mxu0 0
    %173 = vmatprep.subr.bf16.mxu0 0
    %174 = vmatpush1.bf16.msra.mxu0 0
    %175 = vmatprep.subr.bf16.mxu0 0
    %176 = vmatpush1.bf16.msra.mxu0 0
    %177 = vmatprep.subr.bf16.mxu0 0
    %178 = vmatpush1.bf16.msra.mxu0 0
    %179 = vmatprep.subr.bf16.mxu0 0
    %180 = vmatpush1.bf16.msra.mxu0 0
    %181 = vmatprep.subr.bf16.mxu0 0
    %182 = vmatpush1.bf16.msra.mxu0 0
    %183 = vmatprep.subr.bf16.mxu0 0
    %184 = vmatpush1.bf16.msra.mxu0 0
    %185 = vmatprep.subr.bf16.mxu0 0
    %186 = vmatpush1.bf16.msra.mxu0 0
    %187 = vmatprep.subr.bf16.mxu0 0
    %188 = vmatpush1.bf16.msra.mxu0 0
    %189 = vmatprep.subr.bf16.mxu0 0
    %190 = vmatpush1.bf16.msra.mxu0 0
    %191 = vmatprep.subr.bf16.mxu0 0
    %192 = vmatpush1.bf16.msra.mxu0 0
    %193 = vmatprep.mubr.bf16.mxu0 0
    %194 = vmatmul.mubr.bf16.gmra.mrb[0].mxu0 %v159
    %v195 = vpop.f32.mrb[0].mxu0
    %v196 = vadd.f32 0.0, %v195
    %v197 = vpop.f32.mrb[0].mxu0
    %v198 = vpop.f32.mrb[0].mxu0
    %v199 = vadd.f32 0.0, %v198
    %v200 = vpop.f32.mrb[0].mxu0
    %201 = vdwg.mxu0
    %v202 = vadd.f32 %v122, %v196
    %v203 = vadd.f32 %v123, %v199
    %204 = vst.msk [vmem:[#allocation2] sm:$0xff] %vm59, %v202
    %205 = vst.msk [vmem:[#allocation2 + $0x8] sm:$0xff] %vm59, %v203
    // Predicated region
    $region26: #{tpu_custom_call.1} parent=1 // pred_check
      %p206 = pneg %p22
    $region27: #{tpu_custom_call.1} parent=1 // pred_check_branch
      %208 = sbr.rel (%p206) target = $region29
    $region28: #{tpu_custom_call.1} parent=1 // pred_region
      %v209 = vld [vmem:[#allocation2] sm:$0xff]
      %v210 = vld [vmem:[#allocation2 + $0x8] sm:$0xff]
      %v211 = vld [vmem:[%s4] sm:$0x1]
      %v213 = vlaneseq
      %v214 = vshrl.u32 %v213, 7
      %v215 = vsub.s32 0, %v214
      %v216 = vrot.slane %v211, %v215
      %v218 = vadd.f32 %v209, %v216
      %v219 = vadd.f32 %v210, %v216
      %220 = vst.msk [vmem:[#allocation3] sm:$0xff] %vm59, %v218
      %221 = vst.msk [vmem:[#allocation3 + $0x8] sm:$0xff] %vm59, %v219
    $region29: #{tpu_custom_call.1} parent=1 // pred_fallthru
      _
    // Predicated region
    $region30: #{tpu_custom_call.1} parent=1 // pred_check
      _
    $region31: #{tpu_custom_call.1} parent=1 // pred_check_branch
      %223 = sbr.rel (0) target = $region33
    $region32: #{tpu_custom_call.1} parent=1 // pred_region
      %s225 = ssub.s32 256, 256
      %226 = vsyncadd [#allocation4], %s225
      %s227 = sshll.u32 [#allocation3], 4
      %s228 = int_to_ptr.vmem [resolvable:$true] %s227
      %233 = dma.vmem_to_hbm [thread:$0]  %s228, 256, %s5, [#allocation4], 128, 128, 8
    $region33: #{tpu_custom_call.1} parent=1 // pred_fallthru
      _
    // Predicated region
    $region34: #{tpu_custom_call.1} parent=1 // pred_check
      _
    $region35: #{tpu_custom_call.1} parent=1 // pred_check_branch
      %235 = sbr.rel (0) target = $region37
    $region36: #{tpu_custom_call.1} parent=1 // pred_region
      %236 = dma.done [#allocation4], 256
    $region37: #{tpu_custom_call.1} parent=1 // pred_fallthru
      _
    %237 = vsyncpa [#allocation4], 1

</llo_original>
